<compile_context>
chip_gen: v5e
topology: v5e:2x2
jax: 0.10.0
libtpu: 0.0.40
codegen_flags: <defaults>
</compile_context>

<pallas_src>
import jax
import jax.numpy as jnp
from jax.experimental import pallas as pl
from jax.experimental.pallas import tpu as pltpu


def _round_up(x, m):
    return ((x + m - 1) // m) * m


def _attention_kernel(xv_ref, xa_ref, wv_ref, wa_ref, c_ref, ov_ref, oa_ref):
    xv = xv_ref[...]                                            # (tile_n, D)
    xa = xa_ref[...]

    # Per-row scores with the query pre-folded into the key weights.
    sv = jnp.sum(xv * wv_ref[...], axis=-1, keepdims=True)      # (tile_n, 1)
    sa = jnp.sum(xa * wa_ref[...], axis=-1, keepdims=True)
    d = sv - sa + c_ref[...]                                    # (+ (1,1) bcast)

    # 2-way softmax == sigmoid of the score difference (numerically stable:
    # exp(-d) overflowing to inf yields av == 0 exactly).
    av = 1.0 / (1.0 + jnp.exp(-d))
    aa = 1.0 - av

    ov_ref[...] = (xv * av).astype(ov_ref.dtype)
    oa_ref[...] = (xa * aa).astype(oa_ref.dtype)


def attention_mechanism_forward(domain_encodings, params, *, max_tile_n=1024):
    """domain_encodings: {'v_latents': (N, D), 'attr': (N, D)} float32.

    params: dict with
      'query'         : (Wq (H, D), bq (H,))   -- PyTorch (out, in) layout
      'key_v_latents' : (Wk (H, D), bk (H,))
      'key_attr'      : (Wk (H, D), bk (H,))
      'gw_vector'     : (D,)
    """
    xv = domain_encodings['v_latents']
    xa = domain_encodings['attr']
    N, D = xv.shape

    # ---- tiny wrapper-side algebra (all O(H*D)) -----------------------------
    Wq, bq = params['query']
    q = Wq @ params['gw_vector'] + bq                     # (H,)

    Wkv, bkv = params['key_v_latents']
    Wka, bka = params['key_attr']
    # sum((x @ Wk^T + bk) * q) == x @ (Wk^T q) + bk . q   (exact)
    wv = (Wkv.T @ q).reshape(1, D).astype(jnp.float32)    # (1, D) effective weight
    wa = (Wka.T @ q).reshape(1, D).astype(jnp.float32)
    c_diff = (jnp.dot(bkv, q) - jnp.dot(bka, q)).reshape(1, 1).astype(jnp.float32)

    # ---- tiling -------------------------------------------------------------
    # Keep >= ~4 grid steps (v7x megacore) but never exceed max_tile_n rows;
    # tile_n is a multiple of 8 (sublane); last block may be ragged (masked).
    tile_n = max(8, min(max_tile_n, _round_up(pl.cdiv(N, 4), 8)))
    grid = (pl.cdiv(N, tile_n),)

    x_spec = pl.BlockSpec((tile_n, D), lambda i: (i, 0))
    w_spec = pl.BlockSpec((1, D), lambda i: (0, 0))       # resident across grid
    c_spec = pl.BlockSpec((1, 1), lambda i: (0, 0))
    out_spec = pl.BlockSpec((tile_n, D), lambda i: (i, 0))

    # Advisory cost for the folded, de-padded kernel.
    cost = pl.CostEstimate(
        flops=N * (6 * D + 8),
        transcendentals=N,                                # one exp per row
        bytes_accessed=4 * (4 * N * D + 2 * D + 1),       # x/out streams + resident params
    )

    ov, oa = pl.pallas_call(
        _attention_kernel,
        out_shape=(jax.ShapeDtypeStruct((N, D), xv.dtype),
                   jax.ShapeDtypeStruct((N, D), xa.dtype)),
        grid=grid,
        in_specs=[x_spec, x_spec, w_spec, w_spec, c_spec],
        out_specs=(out_spec, out_spec),
        compiler_params=pltpu.CompilerParams(
            dimension_semantics=("parallel",),            # v7x: shard batch over 2 TCs
            vmem_limit_bytes=32 * 1024 * 1024,            # safe ceiling on v5e/v6e/v7x
        ),
        cost_estimate=cost,
    )(xv, xa, wv, wa, c_diff)

    return {'v_latents': ov, 'attr': oa}


def _reference(domain_encodings, params):
    """Pure-JAX eval-mode reference of the PyTorch forward."""
    Wq, bq = params['query']
    q = Wq @ params['gw_vector'] + bq
    keys = {d: e @ params['key_' + d][0].T + params['key_' + d][1]
            for d, e in domain_encodings.items()}
    s = jnp.stack([jnp.sum(k * q, axis=1) for k in keys.values()])
    a = jax.nn.softmax(s, axis=0)
    return {d: e * a[i][:, None]
            for i, (d, e) in enumerate(domain_encodings.items())}


def _init_linear(key, fan_in, fan_out):
    """Deterministic init mimicking nn.Linear (PyTorch (out, in) layout)."""
    kw, kb = jax.random.split(key)
    bound = 1.0 / jnp.sqrt(fan_in)
    w = jax.random.uniform(kw, (fan_out, fan_in), jnp.float32, -bound, bound)
    b = jax.random.uniform(kb, (fan_out,), jnp.float32, -bound, bound)
    return w, b


def build_params(key, domain_dim, head_size):
    kq, kkv, kka, kg = jax.random.split(key, 4)
    return {
        'query': _init_linear(kq, domain_dim, head_size),
        'key_v_latents': _init_linear(kkv, domain_dim, head_size),
        'key_attr': _init_linear(kka, domain_dim, head_size),
        'gw_vector': jax.random.normal(kg, (domain_dim,), jnp.float32),
    }


if __name__ == "__main__":
    key = jax.random.PRNGKey(0)
    k_xv, k_xa, k_p = jax.random.split(key, 3)

    DOMAIN_DIM, HEAD_SIZE, N = 12, 32, 200   # N not a tile multiple -> ragged last block
    xv = jax.random.normal(k_xv, (N, DOMAIN_DIM), jnp.float32)
    xa = jax.random.normal(k_xa, (N, DOMAIN_DIM), jnp.float32)
    params = build_params(k_p, DOMAIN_DIM, HEAD_SIZE)
    enc = {'v_latents': xv, 'attr': xa}

    out = attention_mechanism_forward(enc, params)
    out = jax.tree_util.tree_map(jax.block_until_ready, out)

    ref = _reference(enc, params)
    for d in enc:
        assert out[d].shape == enc[d].shape
        assert jnp.allclose(out[d], ref[d], atol=1e-5, rtol=1e-5)

    print("KERNEL_OK")
</pallas_src>

<mosaic_0001>
module attributes {stable_mosaic.version = 11 : i64} {
  func.func @_attention_kernel(%arg0: i32, %arg1: memref<56x12xf32, #tpu.memory_space<vmem>>, %arg2: memref<56x12xf32, #tpu.memory_space<vmem>>, %arg3: memref<1x12xf32, #tpu.memory_space<vmem>>, %arg4: memref<1x12xf32, #tpu.memory_space<vmem>>, %arg5: memref<1x1xf32, #tpu.memory_space<vmem>>, %arg6: memref<56x12xf32, #tpu.memory_space<vmem>>, %arg7: memref<56x12xf32, #tpu.memory_space<vmem>>) attributes {dimension_semantics = [#tpu.dimension_semantics<parallel>], iteration_bounds = array<i64: 4>, scalar_prefetch = 0 : i64, scratch_operands = 0 : i64, tpu.core_type = #tpu.core_type<tc>, window_params = [{transform_indices = @transform_0, window_bounds = array<i64: 56, 12>}, {transform_indices = @transform_1, window_bounds = array<i64: 56, 12>}, {pipeline_mode = #tpu.pipeline_mode<synchronous>, transform_indices = @transform_2, window_bounds = array<i64: 1, 12>}, {pipeline_mode = #tpu.pipeline_mode<synchronous>, transform_indices = @transform_3, window_bounds = array<i64: 1, 12>}, {pipeline_mode = #tpu.pipeline_mode<synchronous>, transform_indices = @transform_4, window_bounds = array<i64: 1, 1>}, {transform_indices = @transform_5, window_bounds = array<i64: 56, 12>}, {transform_indices = @transform_6, window_bounds = array<i64: 56, 12>}]} {
    %c0 = arith.constant 0 : index
    %c0_0 = arith.constant 0 : index
    %0 = vector.load %arg1[%c0, %c0_0] : memref<56x12xf32, #tpu.memory_space<vmem>>, vector<56x12xf32>
    %c0_1 = arith.constant 0 : index
    %c0_2 = arith.constant 0 : index
    %1 = vector.load %arg2[%c0_1, %c0_2] : memref<56x12xf32, #tpu.memory_space<vmem>>, vector<56x12xf32>
    %c0_3 = arith.constant 0 : index
    %c0_4 = arith.constant 0 : index
    %2 = vector.load %arg3[%c0_3, %c0_4] : memref<1x12xf32, #tpu.memory_space<vmem>>, vector<1x12xf32>
    %3 = vector.broadcast %2 : vector<1x12xf32> to vector<56x12xf32>
    %4 = arith.mulf %0, %3 : vector<56x12xf32>
    %cst = arith.constant dense<0.000000e+00> : vector<56xf32>
    %5 = vector.multi_reduction <add>, %4, %cst [1] : vector<56x12xf32> to vector<56xf32>
    %6 = vector.shape_cast %5 : vector<56xf32> to vector<56x1xf32>
    %c0_5 = arith.constant 0 : index
    %c0_6 = arith.constant 0 : index
    %7 = vector.load %arg4[%c0_5, %c0_6] : memref<1x12xf32, #tpu.memory_space<vmem>>, vector<1x12xf32>
    %8 = vector.broadcast %7 : vector<1x12xf32> to vector<56x12xf32>
    %9 = arith.mulf %1, %8 : vector<56x12xf32>
    %cst_7 = arith.constant dense<0.000000e+00> : vector<56xf32>
    %10 = vector.multi_reduction <add>, %9, %cst_7 [1] : vector<56x12xf32> to vector<56xf32>
    %11 = vector.shape_cast %10 : vector<56xf32> to vector<56x1xf32>
    %12 = arith.subf %6, %11 : vector<56x1xf32>
    %c0_8 = arith.constant 0 : index
    %c0_9 = arith.constant 0 : index
    %13 = vector.load %arg5[%c0_8, %c0_9] : memref<1x1xf32, #tpu.memory_space<vmem>>, vector<1x1xf32>
    %14 = vector.broadcast %13 : vector<1x1xf32> to vector<56x1xf32>
    %15 = arith.addf %12, %14 : vector<56x1xf32>
    %cst_10 = arith.constant 0.000000e+00 : f32
    %16 = vector.broadcast %cst_10 : f32 to vector<56x1xf32>
    %17 = arith.subf %16, %15 : vector<56x1xf32>
    %18 = math.exp %17 : vector<56x1xf32>
    %cst_11 = arith.constant 1.000000e+00 : f32
    %19 = vector.broadcast %cst_11 : f32 to vector<56x1xf32>
    %20 = arith.addf %19, %18 : vector<56x1xf32>
    %cst_12 = arith.constant 1.000000e+00 : f32
    %21 = vector.broadcast %cst_12 : f32 to vector<56x1xf32>
    %22 = arith.divf %21, %20 : vector<56x1xf32>
    %cst_13 = arith.constant 1.000000e+00 : f32
    %23 = vector.broadcast %cst_13 : f32 to vector<56x1xf32>
    %24 = arith.subf %23, %22 : vector<56x1xf32>
    %25 = vector.broadcast %22 : vector<56x1xf32> to vector<56x12xf32>
    %26 = arith.mulf %0, %25 : vector<56x12xf32>
    %c0_14 = arith.constant 0 : index
    %c0_15 = arith.constant 0 : index
    %27 = vector.load %arg6[%c0_14, %c0_15] : memref<56x12xf32, #tpu.memory_space<vmem>>, vector<56x12xf32>
    tpu.vector_store %arg6[%c0_14, %c0_15], %26 {strides = array<i32>} : memref<56x12xf32, #tpu.memory_space<vmem>>, vector<56x12xf32>,
    %28 = vector.broadcast %24 : vector<56x1xf32> to vector<56x12xf32>
    %29 = arith.mulf %1, %28 : vector<56x12xf32>
    %c0_16 = arith.constant 0 : index
    %c0_17 = arith.constant 0 : index
    %30 = vector.load %arg7[%c0_16, %c0_17] : memref<56x12xf32, #tpu.memory_space<vmem>>, vector<56x12xf32>
    tpu.vector_store %arg7[%c0_16, %c0_17], %29 {strides = array<i32>} : memref<56x12xf32, #tpu.memory_space<vmem>>, vector<56x12xf32>,
    return
  }
  func.func @transform_0(%arg0: i32) -> (i32, i32) {
    %c0_i32 = arith.constant 0 : i32
    %c0_i32_0 = arith.constant 0 : i32
    return %arg0, %c0_i32 : i32, i32
  }
  func.func @transform_1(%arg0: i32) -> (i32, i32) {
    %c0_i32 = arith.constant 0 : i32
    %c0_i32_0 = arith.constant 0 : i32
    return %arg0, %c0_i32 : i32, i32
  }
  func.func @transform_2(%arg0: i32) -> (i32, i32) {
    %c0_i32 = arith.constant 0 : i32
    %c0_i32_0 = arith.constant 0 : i32
    %c0_i32_1 = arith.constant 0 : i32
    return %c0_i32, %c0_i32_0 : i32, i32
  }
  func.func @transform_3(%arg0: i32) -> (i32, i32) {
    %c0_i32 = arith.constant 0 : i32
    %c0_i32_0 = arith.constant 0 : i32
    %c0_i32_1 = arith.constant 0 : i32
    return %c0_i32, %c0_i32_0 : i32, i32
  }
  func.func @transform_4(%arg0: i32) -> (i32, i32) {
    %c0_i32 = arith.constant 0 : i32
    %c0_i32_0 = arith.constant 0 : i32
    %c0_i32_1 = arith.constant 0 : i32
    return %c0_i32, %c0_i32_0 : i32, i32
  }
  func.func @transform_5(%arg0: i32) -> (i32, i32) {
    %c0_i32 = arith.constant 0 : i32
    %c0_i32_0 = arith.constant 0 : i32
    return %arg0, %c0_i32 : i32, i32
  }
  func.func @transform_6(%arg0: i32) -> (i32, i32) {
    %c0_i32 = arith.constant 0 : i32
    %c0_i32_0 = arith.constant 0 : i32
    return %arg0, %c0_i32 : i32, i32
  }
}

</mosaic_0001>

<llo_original>
// kernel: tpu_custom_call.1
$region0: #{tpu_custom_call.1}
  #allocation0 [shape = 'u32[]', space=smem, size = 0x4, offset = 0x4, fixed_abs, tag = 'smem constant byte address 0x4 - core index']
  #allocation1 [shape = 'u32[72,128]{1,0:T(1,128)}', space=vmem, size = 0x9000, scoped, tag = 'internal scratch']
  #allocation2 [shape = 'f32[1,1]{1,0:T(1,128)S(1)}', space=vmem, size = 0x200, scoped, tag = 'scoped memory for tpu_custom_call.1']
  %s0 = inlined_call_operand.vmem [shape: f32[200,12], index: 0, kind: input, shape index: {}]
  %s1 = inlined_call_operand.vmem [shape: f32[200,12], index: 1, kind: input, shape index: {}]
  %s2 = inlined_call_operand.vmem [shape: f32[1,12], index: 2, kind: input, shape index: {}]
  %s3 = inlined_call_operand.vmem [shape: f32[1,12], index: 3, kind: input, shape index: {}]
  %s4 = inlined_call_operand.<no memory space> [shape: f32[1,1], index: 4, kind: input, shape index: {}]
  %s5 = inlined_call_operand.vmem [shape: f32[200,12], index: 5, kind: output, shape index: {0}]
  %s6 = inlined_call_operand.vmem [shape: f32[200,12], index: 6, kind: output, shape index: {1}]
  %7 = xla_tuple %s5, %s6
  %s8 = sld [smem:[#allocation0]]
  $region157: #{tpu_custom_call.1} parent=0
    _
  %s10 = ssub.s32 1, %s8
  %s11 = scalar_select 0, %s10, %s8
  %v12 = vstv %s4
  %13 = vst [vmem:[#allocation2] sm:$0x1] %v12
  $region1: #{tpu_custom_call.1} parent=0
    #allocation3 [shape = 'u8[57344]{0}', space=vmem, size = 0xe000, scoped, tag = 'output window, operand 0']
    #allocation4 [shape = 'u8[57344]{0}', space=vmem, size = 0xe000, scoped, tag = 'output window, operand 1']
    loop: start=0, step=1, limit=6
    $region2: #{tpu_custom_call.1} parent=1 // loop_pre_header
      _
    $region3: #{tpu_custom_call.1} parent=1 // loop_header
      %s15 = sphi 0, %s19
      %p16 = scmp.ge.s32.totalorder %s15, 6
      %s25 = sphi 0, %s27
      %s28 = sphi 0, %s25
      %s29 = sphi 0, %s28
      %s45 = sphi 0, %s29
      %s51 = sphi 0, %s53
      %s54 = sphi 0, %s51
      %s55 = sphi 0, %s54
      %s71 = sphi 0, %s55
      %s75 = sphi 0, %s75
      %s77 = sphi 0, %s75
      %s78 = sphi 0, %s77
      %s92 = sphi 0, %s78
      %s96 = sphi 0, %s96
      %s98 = sphi 0, %s96
      %s99 = sphi 0, %s98
      %s113 = sphi 0, %s99
      %s117 = sphi 0, %s117
      %s119 = sphi 0, %s117
      %s120 = sphi 0, %s119
      %s134 = sphi 0, %s120
      %s140 = sphi 0, %s142
      %s143 = sphi 0, %s140
      %s144 = sphi 0, %s143
      %s160 = sphi 0, %s144
      %s166 = sphi 0, %s168
      %s169 = sphi 0, %s166
      %s170 = sphi 0, %s169
      %s186 = sphi 0, %s170
    $region4: #{tpu_custom_call.1} parent=1 // loop_header_branch
      %18 = sbr.rel (%p16) target = $region8
    $region5: #{tpu_custom_call.1} parent=1 // loop_body
      %s20 = ssub.s32 %s15, 1
      %s21 = ssub.s32 %s15, 2
      %s22 = sadd.s32 %s15, 1
      %s23 = ssub.s32 %s15, %s22
      %p24 = scmp.eq.s32.totalorder %s23, 0
      %s26 = sadd.s32 %s25, 1
      %s27 = scalar_select %p24, %s25, %s26
      %p30 = pneg %p24
      %p31 = scmp.eq.s32.totalorder %s15, 3
      %p32 = por %p30, %p31
      %p33 = scmp.ne.s32.totalorder %s25, %s28
      %p34 = scmp.eq.s32.totalorder %s15, 0
      %p35 = por %p33, %p34
      %p36 = scmp.ne.s32.totalorder %s25, %s28
      %p37 = scmp.eq.s32.totalorder %s20, 3
      %p38 = por %p36, %p37
      %p39 = scmp.ne.s32.totalorder %s28, %s29
      %p40 = scmp.eq.s32.totalorder %s20, 0
      %p41 = por %p39, %p40
      %p42 = scmp.ne.s32.totalorder %s28, %s29
      %p43 = scmp.eq.s32.totalorder %s21, 3
      %p44 = por %p42, %p43
      %p46 = scmp.ne.s32.totalorder %s29, %s45
      %p47 = scmp.eq.s32.totalorder %s21, 0
      %p48 = por %p46, %p47
      %s49 = ssub.s32 %s15, %s22
      %p50 = scmp.eq.s32.totalorder %s49, 0
      %s52 = sadd.s32 %s51, 1
      %s53 = scalar_select %p50, %s51, %s52
      %p56 = pneg %p50
      %p57 = scmp.eq.s32.totalorder %s15, 3
      %p58 = por %p56, %p57
      %p59 = scmp.ne.s32.totalorder %s51, %s54
      %p60 = scmp.eq.s32.totalorder %s15, 0
      %p61 = por %p59, %p60
      %p62 = scmp.ne.s32.totalorder %s51, %s54
      %p63 = scmp.eq.s32.totalorder %s20, 3
      %p64 = por %p62, %p63
      %p65 = scmp.ne.s32.totalorder %s54, %s55
      %p66 = scmp.eq.s32.totalorder %s20, 0
      %p67 = por %p65, %p66
      %p68 = scmp.ne.s32.totalorder %s54, %s55
      %p69 = scmp.eq.s32.totalorder %s21, 3
      %p70 = por %p68, %p69
      %p72 = scmp.ne.s32.totalorder %s55, %s71
      %p73 = scmp.eq.s32.totalorder %s21, 0
      %p74 = por %p72, %p73
      %s76 = sadd.s32 %s75, 1
      %p79 = scmp.eq.s32.totalorder %s15, 3
      %p80 = scmp.ne.s32.totalorder %s75, %s77
      %p81 = scmp.eq.s32.totalorder %s15, 0
      %p82 = por %p80, %p81
      %p83 = scmp.ne.s32.totalorder %s75, %s77
      %p84 = scmp.eq.s32.totalorder %s20, 3
      %p85 = por %p83, %p84
      %p86 = scmp.ne.s32.totalorder %s77, %s78
      %p87 = scmp.eq.s32.totalorder %s20, 0
      %p88 = por %p86, %p87
      %p89 = scmp.ne.s32.totalorder %s77, %s78
      %p90 = scmp.eq.s32.totalorder %s21, 3
      %p91 = por %p89, %p90
      %p93 = scmp.ne.s32.totalorder %s78, %s92
      %p94 = scmp.eq.s32.totalorder %s21, 0
      %p95 = por %p93, %p94
      %s97 = sadd.s32 %s96, 1
      %p100 = scmp.eq.s32.totalorder %s15, 3
      %p101 = scmp.ne.s32.totalorder %s96, %s98
      %p102 = scmp.eq.s32.totalorder %s15, 0
      %p103 = por %p101, %p102
      %p104 = scmp.ne.s32.totalorder %s96, %s98
      %p105 = scmp.eq.s32.totalorder %s20, 3
      %p106 = por %p104, %p105
      %p107 = scmp.ne.s32.totalorder %s98, %s99
      %p108 = scmp.eq.s32.totalorder %s20, 0
      %p109 = por %p107, %p108
      %p110 = scmp.ne.s32.totalorder %s98, %s99
      %p111 = scmp.eq.s32.totalorder %s21, 3
      %p112 = por %p110, %p111
      %p114 = scmp.ne.s32.totalorder %s99, %s113
      %p115 = scmp.eq.s32.totalorder %s21, 0
      %p116 = por %p114, %p115
      %s118 = sadd.s32 %s117, 1
      %p121 = scmp.eq.s32.totalorder %s15, 3
      %p122 = scmp.ne.s32.totalorder %s117, %s119
      %p123 = scmp.eq.s32.totalorder %s15, 0
      %p124 = por %p122, %p123
      %p125 = scmp.ne.s32.totalorder %s117, %s119
      %p126 = scmp.eq.s32.totalorder %s20, 3
      %p127 = por %p125, %p126
      %p128 = scmp.ne.s32.totalorder %s119, %s120
      %p129 = scmp.eq.s32.totalorder %s20, 0
      %p130 = por %p128, %p129
      %p131 = scmp.ne.s32.totalorder %s119, %s120
      %p132 = scmp.eq.s32.totalorder %s21, 3
      %p133 = por %p131, %p132
      %p135 = scmp.ne.s32.totalorder %s120, %s134
      %p136 = scmp.eq.s32.totalorder %s21, 0
      %p137 = por %p135, %p136
      %s138 = ssub.s32 %s15, %s22
      %p139 = scmp.eq.s32.totalorder %s138, 0
      %s141 = sadd.s32 %s140, 1
      %s142 = scalar_select %p139, %s140, %s141
      %p145 = pneg %p139
      %p146 = scmp.eq.s32.totalorder %s15, 3
      %p147 = por %p145, %p146
      %p148 = scmp.ne.s32.totalorder %s140, %s143
      %p149 = scmp.eq.s32.totalorder %s15, 0
      %p150 = por %p148, %p149
      %p151 = scmp.ne.s32.totalorder %s140, %s143
      %p152 = scmp.eq.s32.totalorder %s20, 3
      %p153 = por %p151, %p152
      %p154 = scmp.ne.s32.totalorder %s143, %s144
      %p155 = scmp.eq.s32.totalorder %s20, 0
      %p156 = por %p154, %p155
      %p157 = scmp.ne.s32.totalorder %s143, %s144
      %p158 = scmp.eq.s32.totalorder %s21, 3
      %p159 = por %p157, %p158
      %p161 = scmp.ne.s32.totalorder %s144, %s160
      %p162 = scmp.eq.s32.totalorder %s21, 0
      %p163 = por %p161, %p162
      %s164 = ssub.s32 %s15, %s22
      %p165 = scmp.eq.s32.totalorder %s164, 0
      %s167 = sadd.s32 %s166, 1
      %s168 = scalar_select %p165, %s166, %s167
      %p171 = pneg %p165
      %p172 = scmp.eq.s32.totalorder %s15, 3
      %p173 = por %p171, %p172
      %p174 = scmp.ne.s32.totalorder %s166, %s169
      %p175 = scmp.eq.s32.totalorder %s15, 0
      %p176 = por %p174, %p175
      %p177 = scmp.ne.s32.totalorder %s166, %s169
      %p178 = scmp.eq.s32.totalorder %s20, 3
      %p179 = por %p177, %p178
      %p180 = scmp.ne.s32.totalorder %s169, %s170
      %p181 = scmp.eq.s32.totalorder %s20, 0
      %p182 = por %p180, %p181
      %p183 = scmp.ne.s32.totalorder %s169, %s170
      %p184 = scmp.eq.s32.totalorder %s21, 3
      %p185 = por %p183, %p184
      %p187 = scmp.ne.s32.totalorder %s170, %s186
      %p188 = scmp.eq.s32.totalorder %s21, 0
      %p189 = por %p187, %p188
      %p190 = scmp.le.s32.totalorder 1, %s15
      %p191 = scmp.lt.s32.totalorder %s15, 5
      %p192 = pnand %p190, %p191
      %p193 = pneg %p192
      // Predicated region
      $region9: #{tpu_custom_call.1} parent=5 // pred_check
        _
      $region10: #{tpu_custom_call.1} parent=5 // pred_check_branch
        %195 = sbr.rel (%p192) target = $region12
      $region11: #{tpu_custom_call.1} parent=5 // pred_region
        %s196 = ssub.s32 %s15, 1
        // Predicated region
        $region13: #{tpu_custom_call.1} parent=11 // pred_check
          %p197 = pneg %p88
        $region14: #{tpu_custom_call.1} parent=11 // pred_check_branch
          %199 = sbr.rel (%p197) target = $region16
        $region15: #{tpu_custom_call.1} parent=11 // pred_region
          _
        $region16: #{tpu_custom_call.1} parent=11 // pred_fallthru
          _
        // Predicated region
        $region17: #{tpu_custom_call.1} parent=11 // pred_check
          %p200 = pneg %p109
        $region18: #{tpu_custom_call.1} parent=11 // pred_check_branch
          %202 = sbr.rel (%p200) target = $region20
        $region19: #{tpu_custom_call.1} parent=11 // pred_region
          _
        $region20: #{tpu_custom_call.1} parent=11 // pred_fallthru
          _
        // Predicated region
        $region21: #{tpu_custom_call.1} parent=11 // pred_check
          %p203 = pneg %p130
        $region22: #{tpu_custom_call.1} parent=11 // pred_check_branch
          %205 = sbr.rel (%p203) target = $region24
        $region23: #{tpu_custom_call.1} parent=11 // pred_region
          _
        $region24: #{tpu_custom_call.1} parent=11 // pred_fallthru
          _
      $region12: #{tpu_custom_call.1} parent=5 // pred_fallthru
        _
      %p206 = scmp.lt.s32.totalorder %s15, 4
      // Predicated region
      $region25: #{tpu_custom_call.1} parent=5 // pred_check
        %p207 = pneg %p206
      $region26: #{tpu_custom_call.1} parent=5 // pred_check_branch
        %209 = sbr.rel (%p207) target = $region28
      $region27: #{tpu_custom_call.1} parent=5 // pred_region
        // Predicated region
        $region29: #{tpu_custom_call.1} parent=27 // pred_check
          %p210 = pneg %p35
        $region30: #{tpu_custom_call.1} parent=27 // pred_check_branch
          %212 = sbr.rel (%p210) target = $region32
        $region31: #{tpu_custom_call.1} parent=27 // pred_region
          %s213 = smul.u32 7, %s15
          %s214 = ssub.s32 25, %s213
          %p215 = scmp.lt.s32.totalorder %s214, 7
          %s216 = scalar_select %p215, %s214, 7
          %s217 = smul.u32 8, %s216
          %p218 = scmp.lt.s32.totalorder %s213, 24
          %s219 = scalar_select %p218, %s213, 24
          %s220 = smul.addr %s219, 8
          %s221 = scalar_lea.vmem %s0, %s220
          %s222 = smul.u32 7, %s15
          %s223 = ssub.s32 25, %s222
          %p224 = scmp.lt.s32.totalorder %s223, 7
          %s225 = scalar_select %p224, %s223, 7
          %s226 = smul.u32 8, %s225
        $region32: #{tpu_custom_call.1} parent=27 // pred_fallthru
          _
        // Predicated region
        $region33: #{tpu_custom_call.1} parent=27 // pred_check
          %p227 = pneg %p61
        $region34: #{tpu_custom_call.1} parent=27 // pred_check_branch
          %229 = sbr.rel (%p227) target = $region36
        $region35: #{tpu_custom_call.1} parent=27 // pred_region
          %s230 = smul.u32 7, %s15
          %s231 = ssub.s32 25, %s230
          %p232 = scmp.lt.s32.totalorder %s231, 7
          %s233 = scalar_select %p232, %s231, 7
          %s234 = smul.u32 8, %s233
          %p235 = scmp.lt.s32.totalorder %s230, 24
          %s236 = scalar_select %p235, %s230, 24
          %s237 = smul.addr %s236, 8
          %s238 = scalar_lea.vmem %s1, %s237
          %s239 = smul.u32 7, %s15
          %s240 = ssub.s32 25, %s239
          %p241 = scmp.lt.s32.totalorder %s240, 7
          %s242 = scalar_select %p241, %s240, 7
          %s243 = smul.u32 8, %s242
        $region36: #{tpu_custom_call.1} parent=27 // pred_fallthru
          _
      $region28: #{tpu_custom_call.1} parent=5 // pred_fallthru
        _
      %p244 = scmp.le.s32.totalorder 1, %s15
      %p245 = scmp.lt.s32.totalorder %s15, 5
      %p246 = pnand %p244, %p245
      %p247 = pneg %p246
      // Predicated region
      $region37: #{tpu_custom_call.1} parent=5 // pred_check
        _
      $region38: #{tpu_custom_call.1} parent=5 // pred_check_branch
        %249 = sbr.rel (%p246) target = $region40
      $region39: #{tpu_custom_call.1} parent=5 // pred_region
        %s250 = ssub.s32 %s15, 1
        %s251 = smul.u32 7, %s20
        %s252 = ssub.s32 25, %s251
        %p253 = scmp.lt.s32.totalorder %s252, 7
        %s254 = scalar_select %p253, %s252, 7
        %s255 = smul.u32 8, %s254
        %p256 = scmp.lt.s32.totalorder %s251, 24
        %s257 = scalar_select %p256, %s251, 24
        %s258 = smul.addr %s257, 8
        %s259 = scalar_lea.vmem %s0, %s258
        %p260 = pneg %p41
        %p261 = pneg %p38
        %s262 = smul.u32 7, %s20
        %s263 = ssub.s32 25, %s262
        %p264 = scmp.lt.s32.totalorder %s263, 7
        %s265 = scalar_select %p264, %s263, 7
        %s266 = smul.u32 8, %s265
        %p267 = scmp.lt.s32.totalorder %s262, 24
        %s268 = scalar_select %p267, %s262, 24
        %s269 = smul.addr %s268, 8
        %s270 = scalar_lea.vmem %s1, %s269
        %p271 = pneg %p67
        %p272 = pneg %p64
        %p273 = pneg %p88
        %p274 = pneg %p85
        %p275 = pneg %p109
        %p276 = pneg %p106
        %p277 = pneg %p130
        %p278 = pneg %p127
        %p279 = pneg %p156
        %p280 = pneg %p153
        %s281 = sand.u32 %s143, 1
        %s282 = sand.u32 %s143, 1
        %s283 = smul.addr %s282, 56
        %s284 = scalar_lea.vmem [#allocation3], %s283
        %p285 = pneg %p182
        %p286 = pneg %p179
        %s287 = sand.u32 %s169, 1
        %s288 = sand.u32 %s169, 1
        %s289 = smul.addr %s288, 56
        %s290 = scalar_lea.vmem [#allocation4], %s289
        %s291 = smul.u32 7, %s20
        %s292 = ssub.s32 25, %s291
        %p293 = scmp.lt.s32.totalorder %s292, 7
        %s294 = scalar_select %p293, %s292, 7
        %s295 = smul.u32 8, %s294
        %p296 = scmp.lt.s32.totalorder %s291, 24
        %s297 = scalar_select %p296, %s291, 24
        %s298 = smul.addr %s297, 8
        %s299 = scalar_lea.vmem %s0, %s298
        %s300 = smul.u32 7, %s20
        %s301 = ssub.s32 25, %s300
        %p302 = scmp.lt.s32.totalorder %s301, 7
        %s303 = scalar_select %p302, %s301, 7
        %s304 = smul.u32 8, %s303
        %s305 = smul.u32 7, %s20
        %s306 = ssub.s32 25, %s305
        %p307 = scmp.lt.s32.totalorder %s306, 7
        %s308 = scalar_select %p307, %s306, 7
        %s309 = smul.u32 8, %s308
        %p310 = scmp.lt.s32.totalorder %s305, 24
        %s311 = scalar_select %p310, %s305, 24
        %s312 = smul.addr %s311, 8
        %s313 = scalar_lea.vmem %s1, %s312
        %s314 = smul.u32 7, %s20
        %s315 = ssub.s32 25, %s314
        %p316 = scmp.lt.s32.totalorder %s315, 7
        %s317 = scalar_select %p316, %s315, 7
        %s318 = smul.u32 8, %s317
        %s319 = smul.u32 7, %s20
        %s320 = ssub.s32 25, %s319
        %p321 = scmp.lt.s32.totalorder %s320, 7
        %s322 = scalar_select %p321, %s320, 7
        %s323 = smul.u32 8, %s322
        %s324 = smul.u32 7, %s20
        %s325 = ssub.s32 25, %s324
        %p326 = scmp.lt.s32.totalorder %s325, 7
        %s327 = scalar_select %p326, %s325, 7
        %s328 = smul.u32 8, %s327
        %v329 = vld [vmem:[%s299] sm:$0xff]
        %v330 = vld [vmem:[%s299 + $0x8] sm:$0xff]
        %v331 = vld [vmem:[%s299 + $0x10] sm:$0xff]
        %v332 = vld [vmem:[%s299 + $0x18] sm:$0xff]
        %v333 = vld [vmem:[%s299 + $0x20] sm:$0xff]
        %v334 = vld [vmem:[%s299 + $0x28] sm:$0xff]
        %v335 = vld [vmem:[%s299 + $0x30] sm:$0xff]
        %v336 = vld [vmem:[%s313] sm:$0xff]
        %v337 = vld [vmem:[%s313 + $0x8] sm:$0xff]
        %v338 = vld [vmem:[%s313 + $0x10] sm:$0xff]
        %v339 = vld [vmem:[%s313 + $0x18] sm:$0xff]
        %v340 = vld [vmem:[%s313 + $0x20] sm:$0xff]
        %v341 = vld [vmem:[%s313 + $0x28] sm:$0xff]
        %v342 = vld [vmem:[%s313 + $0x30] sm:$0xff]
        %v343 = vld [vmem:[%s2] sm:$0x1]
        %v345 = vperm.slane %v343, 0
        %v347 = vmul.f32 %v329, %v345
        %v348 = vmul.f32 %v330, %v345
        %v349 = vmul.f32 %v331, %v345
        %v350 = vmul.f32 %v332, %v345
        %v351 = vmul.f32 %v333, %v345
        %v352 = vmul.f32 %v334, %v345
        %v353 = vmul.f32 %v335, %v345
        %vm354 = vcmask 97280
        %v355 = vsel %vm354, %v347, 0.0
        %356 = vadd.xlane.f32.xlu0 %v355
        %v357 = vpop.xlane.xlu0 %356
        %v358 = vsel %vm354, %v348, 0.0
        %359 = vadd.xlane.f32.xlu0 %v358
        %v360 = vpop.xlane.xlu0 %359
        %v361 = vsel %vm354, %v349, 0.0
        %362 = vadd.xlane.f32.xlu0 %v361
        %v363 = vpop.xlane.xlu0 %362
        %v364 = vsel %vm354, %v350, 0.0
        %365 = vadd.xlane.f32.xlu0 %v364
        %v366 = vpop.xlane.xlu0 %365
        %v367 = vsel %vm354, %v351, 0.0
        %368 = vadd.xlane.f32.xlu0 %v367
        %v369 = vpop.xlane.xlu0 %368
        %v370 = vsel %vm354, %v352, 0.0
        %371 = vadd.xlane.f32.xlu0 %v370
        %v372 = vpop.xlane.xlu0 %371
        %v373 = vsel %vm354, %v353, 0.0
        %374 = vadd.xlane.f32.xlu0 %v373
        %v375 = vpop.xlane.xlu0 %374
        %v376 = vld [vmem:[%s3] sm:$0x1]
        %v378 = vperm.slane %v376, 0
        %v380 = vmul.f32 %v336, %v378
        %v381 = vmul.f32 %v337, %v378
        %v382 = vmul.f32 %v338, %v378
        %v383 = vmul.f32 %v339, %v378
        %v384 = vmul.f32 %v340, %v378
        %v385 = vmul.f32 %v341, %v378
        %v386 = vmul.f32 %v342, %v378
        %v387 = vsel %vm354, %v380, 0.0
        %388 = vadd.xlane.f32.xlu0 %v387
        %v389 = vpop.xlane.xlu0 %388
        %v390 = vsel %vm354, %v381, 0.0
        %391 = vadd.xlane.f32.xlu0 %v390
        %v392 = vpop.xlane.xlu0 %391
        %v393 = vsel %vm354, %v382, 0.0
        %394 = vadd.xlane.f32.xlu0 %v393
        %v395 = vpop.xlane.xlu0 %394
        %v396 = vsel %vm354, %v383, 0.0
        %397 = vadd.xlane.f32.xlu0 %v396
        %v398 = vpop.xlane.xlu0 %397
        %v399 = vsel %vm354, %v384, 0.0
        %400 = vadd.xlane.f32.xlu0 %v399
        %v401 = vpop.xlane.xlu0 %400
        %v402 = vsel %vm354, %v385, 0.0
        %403 = vadd.xlane.f32.xlu0 %v402
        %v404 = vpop.xlane.xlu0 %403
        %v405 = vsel %vm354, %v386, 0.0
        %406 = vadd.xlane.f32.xlu0 %v405
        %v407 = vpop.xlane.xlu0 %406
        %v408 = vsub.f32 %v357, %v389
        %v409 = vsub.f32 %v360, %v392
        %v410 = vsub.f32 %v363, %v395
        %v411 = vsub.f32 %v366, %v398
        %v412 = vsub.f32 %v369, %v401
        %v413 = vsub.f32 %v372, %v404
        %v414 = vsub.f32 %v375, %v407
        %v415 = vld [vmem:[#allocation2] sm:$0x1]
        %v417 = vperm.slane %v415, 0
        %v419 = vadd.f32 %v408, %v417
        %v420 = vadd.f32 %v409, %v417
        %v421 = vadd.f32 %v410, %v417
        %v422 = vadd.f32 %v411, %v417
        %v423 = vadd.f32 %v412, %v417
        %v424 = vadd.f32 %v413, %v417
        %v425 = vadd.f32 %v414, %v417
        %v426 = vsub.f32 0.0, %v419
        %v427 = vsub.f32 0.0, %v420
        %v428 = vsub.f32 0.0, %v421
        %v429 = vsub.f32 0.0, %v422
        %v430 = vsub.f32 0.0, %v423
        %v431 = vsub.f32 0.0, %v424
        %v432 = vsub.f32 0.0, %v425
        %v433 = vmul.f32 %v426, 1.442695
        %v434 = vpow.pop %v433
        %v435 = vmul.f32 %v427, 1.442695
        %v436 = vpow.pop %v435
        %v437 = vmul.f32 %v428, 1.442695
        %v438 = vpow.pop %v437
        %v439 = vmul.f32 %v429, 1.442695
        %v440 = vpow.pop %v439
        %v441 = vmul.f32 %v430, 1.442695
        %v442 = vpow.pop %v441
        %v443 = vmul.f32 %v431, 1.442695
        %v444 = vpow.pop %v443
        %v445 = vmul.f32 %v432, 1.442695
        %v446 = vpow.pop %v445
        %v447 = vadd.f32 %v434, 1.0
        %v448 = vadd.f32 %v436, 1.0
        %v449 = vadd.f32 %v438, 1.0
        %v450 = vadd.f32 %v440, 1.0
        %v451 = vadd.f32 %v442, 1.0
        %v452 = vadd.f32 %v444, 1.0
        %v453 = vadd.f32 %v446, 1.0
        %v454 = vrcp.pop %v447
        %v455 = vmul.f32 %v447, %v454
        %v456 = vsub.f32 1.0, %v455
        %v457 = vmul.f32 %v454, %v456
        %v458 = vadd.f32 %v454, %v457
        %vm459 = vweird.f32 %v447
        %vm460 = vweird.f32 %v454
        %vm461 = vmor %vm459, %vm460
        %v462 = vsel %vm461, %v454, %v458
        %v463 = vand.u32 2147483647, %v447
        %vm464 = vcmp.eq.f32.partialorder %v463, 8.507059e+37
        %v465 = vand.u32 %v447, 2147483648
        %v466 = vor.u32 1.1754944e-38, %v465
        %v467 = vsel %vm464, %v466, %v462
        %v468 = vmul.f32 1.0, %v467
        %v469 = vrcp.pop %v448
        %v470 = vmul.f32 %v448, %v469
        %v471 = vsub.f32 1.0, %v470
        %v472 = vmul.f32 %v469, %v471
        %v473 = vadd.f32 %v469, %v472
        %vm474 = vweird.f32 %v448
        %vm475 = vweird.f32 %v469
        %vm476 = vmor %vm474, %vm475
        %v477 = vsel %vm476, %v469, %v473
        %v478 = vand.u32 2147483647, %v448
        %vm479 = vcmp.eq.f32.partialorder %v478, 8.507059e+37
        %v480 = vand.u32 %v448, 2147483648
        %v481 = vor.u32 1.1754944e-38, %v480
        %v482 = vsel %vm479, %v481, %v477
        %v483 = vmul.f32 1.0, %v482
        %v484 = vrcp.pop %v449
        %v485 = vmul.f32 %v449, %v484
        %v486 = vsub.f32 1.0, %v485
        %v487 = vmul.f32 %v484, %v486
        %v488 = vadd.f32 %v484, %v487
        %vm489 = vweird.f32 %v449
        %vm490 = vweird.f32 %v484
        %vm491 = vmor %vm489, %vm490
        %v492 = vsel %vm491, %v484, %v488
        %v493 = vand.u32 2147483647, %v449
        %vm494 = vcmp.eq.f32.partialorder %v493, 8.507059e+37
        %v495 = vand.u32 %v449, 2147483648
        %v496 = vor.u32 1.1754944e-38, %v495
        %v497 = vsel %vm494, %v496, %v492
        %v498 = vmul.f32 1.0, %v497
        %v499 = vrcp.pop %v450
        %v500 = vmul.f32 %v450, %v499
        %v501 = vsub.f32 1.0, %v500
        %v502 = vmul.f32 %v499, %v501
        %v503 = vadd.f32 %v499, %v502
        %vm504 = vweird.f32 %v450
        %vm505 = vweird.f32 %v499
        %vm506 = vmor %vm504, %vm505
        %v507 = vsel %vm506, %v499, %v503
        %v508 = vand.u32 2147483647, %v450
        %vm509 = vcmp.eq.f32.partialorder %v508, 8.507059e+37
        %v510 = vand.u32 %v450, 2147483648
        %v511 = vor.u32 1.1754944e-38, %v510
        %v512 = vsel %vm509, %v511, %v507
        %v513 = vmul.f32 1.0, %v512
        %v514 = vrcp.pop %v451
        %v515 = vmul.f32 %v451, %v514
        %v516 = vsub.f32 1.0, %v515
        %v517 = vmul.f32 %v514, %v516
        %v518 = vadd.f32 %v514, %v517
        %vm519 = vweird.f32 %v451
        %vm520 = vweird.f32 %v514
        %vm521 = vmor %vm519, %vm520
        %v522 = vsel %vm521, %v514, %v518
        %v523 = vand.u32 2147483647, %v451
        %vm524 = vcmp.eq.f32.partialorder %v523, 8.507059e+37
        %v525 = vand.u32 %v451, 2147483648
        %v526 = vor.u32 1.1754944e-38, %v525
        %v527 = vsel %vm524, %v526, %v522
        %v528 = vmul.f32 1.0, %v527
        %v529 = vrcp.pop %v452
        %v530 = vmul.f32 %v452, %v529
        %v531 = vsub.f32 1.0, %v530
        %v532 = vmul.f32 %v529, %v531
        %v533 = vadd.f32 %v529, %v532
        %vm534 = vweird.f32 %v452
        %vm535 = vweird.f32 %v529
        %vm536 = vmor %vm534, %vm535
        %v537 = vsel %vm536, %v529, %v533
        %v538 = vand.u32 2147483647, %v452
        %vm539 = vcmp.eq.f32.partialorder %v538, 8.507059e+37
        %v540 = vand.u32 %v452, 2147483648
        %v541 = vor.u32 1.1754944e-38, %v540
        %v542 = vsel %vm539, %v541, %v537
        %v543 = vmul.f32 1.0, %v542
        %v544 = vrcp.pop %v453
        %v545 = vmul.f32 %v453, %v544
        %v546 = vsub.f32 1.0, %v545
        %v547 = vmul.f32 %v544, %v546
        %v548 = vadd.f32 %v544, %v547
        %vm549 = vweird.f32 %v453
        %vm550 = vweird.f32 %v544
        %vm551 = vmor %vm549, %vm550
        %v552 = vsel %vm551, %v544, %v548
        %v553 = vand.u32 2147483647, %v453
        %vm554 = vcmp.eq.f32.partialorder %v553, 8.507059e+37
        %v555 = vand.u32 %v453, 2147483648
        %v556 = vor.u32 1.1754944e-38, %v555
        %v557 = vsel %vm554, %v556, %v552
        %v558 = vmul.f32 1.0, %v557
        %v559 = vsub.f32 1.0, %v468
        %v560 = vsub.f32 1.0, %v483
        %v561 = vsub.f32 1.0, %v498
        %v562 = vsub.f32 1.0, %v513
        %v563 = vsub.f32 1.0, %v528
        %v564 = vsub.f32 1.0, %v543
        %v565 = vsub.f32 1.0, %v558
        %567 = vset.pattern.permute.xlu0 0
        %568 = vperm.xlu0 %567, %v468
        %v569 = vpop.permute.xlu0 %568
        %572 = vset.pattern.permute.xlu0 0
        %573 = vperm.xlu0 %572, %v483
        %v574 = vpop.permute.xlu0 %573
        %577 = vset.pattern.permute.xlu0 0
        %578 = vperm.xlu0 %577, %v498
        %v579 = vpop.permute.xlu0 %578
        %582 = vset.pattern.permute.xlu0 0
        %583 = vperm.xlu0 %582, %v513
        %v584 = vpop.permute.xlu0 %583
        %587 = vset.pattern.permute.xlu0 0
        %588 = vperm.xlu0 %587, %v528
        %v589 = vpop.permute.xlu0 %588
        %592 = vset.pattern.permute.xlu0 0
        %593 = vperm.xlu0 %592, %v543
        %v594 = vpop.permute.xlu0 %593
        %597 = vset.pattern.permute.xlu0 0
        %598 = vperm.xlu0 %597, %v558
        %v599 = vpop.permute.xlu0 %598
        %v601 = vmul.f32 %v329, %v569
        %v602 = vmul.f32 %v330, %v574
        %v603 = vmul.f32 %v331, %v579
        %v604 = vmul.f32 %v332, %v584
        %v605 = vmul.f32 %v333, %v589
        %v606 = vmul.f32 %v334, %v594
        %v607 = vmul.f32 %v335, %v599
        %608 = vst.msk [vmem:[%s284] sm:$0xff] %vm354, %v601
        %609 = vst.msk [vmem:[%s284 + $0x8] sm:$0xff] %vm354, %v602
        %610 = vst.msk [vmem:[%s284 + $0x10] sm:$0xff] %vm354, %v603
        %611 = vst.msk [vmem:[%s284 + $0x18] sm:$0xff] %vm354, %v604
        %612 = vst.msk [vmem:[%s284 + $0x20] sm:$0xff] %vm354, %v605
        %613 = vst.msk [vmem:[%s284 + $0x28] sm:$0xff] %vm354, %v606
        %614 = vst.msk [vmem:[%s284 + $0x30] sm:$0xff] %vm354, %v607
        %616 = vset.pattern.permute.xlu0 0
        %617 = vperm.xlu0 %616, %v559
        %v618 = vpop.permute.xlu0 %617
        %621 = vset.pattern.permute.xlu0 0
        %622 = vperm.xlu0 %621, %v560
        %v623 = vpop.permute.xlu0 %622
        %626 = vset.pattern.permute.xlu0 0
        %627 = vperm.xlu0 %626, %v561
        %v628 = vpop.permute.xlu0 %627
        %631 = vset.pattern.permute.xlu0 0
        %632 = vperm.xlu0 %631, %v562
        %v633 = vpop.permute.xlu0 %632
        %636 = vset.pattern.permute.xlu0 0
        %637 = vperm.xlu0 %636, %v563
        %v638 = vpop.permute.xlu0 %637
        %641 = vset.pattern.permute.xlu0 0
        %642 = vperm.xlu0 %641, %v564
        %v643 = vpop.permute.xlu0 %642
        %646 = vset.pattern.permute.xlu0 0
        %647 = vperm.xlu0 %646, %v565
        %v648 = vpop.permute.xlu0 %647
        %v650 = vmul.f32 %v336, %v618
        %v651 = vmul.f32 %v337, %v623
        %v652 = vmul.f32 %v338, %v628
        %v653 = vmul.f32 %v339, %v633
        %v654 = vmul.f32 %v340, %v638
        %v655 = vmul.f32 %v341, %v643
        %v656 = vmul.f32 %v342, %v648
        %657 = vst.msk [vmem:[%s290] sm:$0xff] %vm354, %v650
        %658 = vst.msk [vmem:[%s290 + $0x8] sm:$0xff] %vm354, %v651
        %659 = vst.msk [vmem:[%s290 + $0x10] sm:$0xff] %vm354, %v652
        %660 = vst.msk [vmem:[%s290 + $0x18] sm:$0xff] %vm354, %v653
        %661 = vst.msk [vmem:[%s290 + $0x20] sm:$0xff] %vm354, %v654
        %662 = vst.msk [vmem:[%s290 + $0x28] sm:$0xff] %vm354, %v655
        %663 = vst.msk [vmem:[%s290 + $0x30] sm:$0xff] %vm354, %v656
        %s664 = sand.u32 %s143, 1
        %s665 = sand.u32 %s143, 1
        %s666 = smul.addr %s665, 56
        %s667 = scalar_lea.vmem [#allocation3], %s666
        %s668 = sand.u32 %s169, 1
        %s669 = sand.u32 %s169, 1
        %s670 = smul.addr %s669, 56
        %s671 = scalar_lea.vmem [#allocation4], %s670
        // Predicated region
        $region41: #{tpu_custom_call.1} parent=39 // pred_check
          %p672 = pneg %p153
        $region42: #{tpu_custom_call.1} parent=39 // pred_check_branch
          %674 = sbr.rel (%p672) target = $region44
        $region43: #{tpu_custom_call.1} parent=39 // pred_region
          %s675 = smul.u32 7, %s20
          %s676 = ssub.s32 25, %s675
          %p677 = scmp.lt.s32.totalorder %s676, 7
          %s678 = scalar_select %p677, %s676, 7
          %s679 = smul.u32 8, %s678
          %p680 = scmp.ne.s32.totalorder 0, %s679
          %s681 = smul.addr %s675, 8
          %s682 = scalar_lea.vmem %s5, %s681
          // Predicated region
          $region45: #{tpu_custom_call.1} parent=43 // pred_check
            %p683 = pneg %p680
          $region46: #{tpu_custom_call.1} parent=43 // pred_check_branch
            %685 = sbr.rel (%p683) target = $region48
          $region47: #{tpu_custom_call.1} parent=43 // pred_region
            // Predicated region
            $region49: #{tpu_custom_call.1} parent=47 // pred_check
              _
            $region50: #{tpu_custom_call.1} parent=47 // pred_check_branch
              %687 = sbr.rel (0) target = $region52
            $region51: #{tpu_custom_call.1} parent=47 // pred_region
              // Predicated region
              $region71: #{tpu_custom_call.1} parent=51 // pred_check
                _
              $region72: #{tpu_custom_call.1} parent=51 // pred_check_branch
                %750 = sbr.rel (0) target = $region74
              $region73: #{tpu_custom_call.1} parent=51 // pred_region
                %s751 = sdiv.u32.pop %s678, 7
                %s752 = srem.u32.pop %s678, 7
                // While loop
                $region75: #{tpu_custom_call.1} parent=73 // loop_pre_header
                  _
                $region76: #{tpu_custom_call.1} parent=73 // loop_header
                  %s754 = sphi 0, %s756
                  %p755 = scmp.ge.s32.totalorder %s754, %s751
                  %s759 = sphi 0, %s778
                  %s760 = sphi %s667, %s781
                  %s761 = sphi %s682, %s782
                $region77: #{tpu_custom_call.1} parent=73 // loop_header_branch
                  %758 = sbr.rel (%p755) target = $region81
                $region78: #{tpu_custom_call.1} parent=73 // loop_body
                  %v762 = vld [vmem:[%s760] sm:$0xff]
                  %763 = vst [vmem:[%s761] sm:$0xff] %v762
                  %v764 = vld [vmem:[%s760 + $0x8] sm:$0xff]
                  %765 = vst [vmem:[%s761 + $0x8] sm:$0xff] %v764
                  %v766 = vld [vmem:[%s760 + $0x10] sm:$0xff]
                  %767 = vst [vmem:[%s761 + $0x10] sm:$0xff] %v766
                  %v768 = vld [vmem:[%s760 + $0x18] sm:$0xff]
                  %769 = vst [vmem:[%s761 + $0x18] sm:$0xff] %v768
                  %v770 = vld [vmem:[%s760 + $0x20] sm:$0xff]
                  %771 = vst [vmem:[%s761 + $0x20] sm:$0xff] %v770
                  %v772 = vld [vmem:[%s760 + $0x28] sm:$0xff]
                  %773 = vst [vmem:[%s761 + $0x28] sm:$0xff] %v772
                  %v774 = vld [vmem:[%s760 + $0x30] sm:$0xff]
                  %775 = vst [vmem:[%s761 + $0x30] sm:$0xff] %v774
                  %s776 = sadd.s32 1, %s759
                  %p777 = scmp.ge.s32.totalorder %s776, %s751
                  %s778 = scalar_select %p777, 0, %s776
                  %s779 = smul.u32 %s778, 56
                  %s780 = smul.u32 %s778, 56
                  %s781 = scalar_lea.vmem %s667, %s779 [#allocation3]
                  %s782 = scalar_lea.vmem %s682, %s780
                $region79: #{tpu_custom_call.1} parent=73 // loop_footer
                  %s756 = sadd.s32 %s754, 1
                $region80: #{tpu_custom_call.1} parent=73 // loop_footer_branch
                  %753 = sbr.rel target = $region76
                $region81: #{tpu_custom_call.1} parent=73 // loop_exit
                  _
                %s783 = sdiv.u32.pop %s678, 7
                %s784 = srem.u32.pop %s678, 7
                %s785 = smul.u32 %s783, 7
                %s786 = smul.u32 8, %s785
                %s787 = scalar_lea.vmem %s667, %s786 [#allocation3]
                %s788 = smul.u32 8, %s785
                %s789 = scalar_lea.vmem %s682, %s788
                // While loop
                $region82: #{tpu_custom_call.1} parent=73 // loop_pre_header
                  _
                $region83: #{tpu_custom_call.1} parent=73 // loop_header
                  %s791 = sphi 0, %s793
                  %p792 = scmp.ge.s32.totalorder %s791, %s784
                  %s796 = sphi 0, %s803
                  %s797 = sphi %s787, %s806
                  %s798 = sphi %s789, %s807
                $region84: #{tpu_custom_call.1} parent=73 // loop_header_branch
                  %795 = sbr.rel (%p792) target = $region88
                $region85: #{tpu_custom_call.1} parent=73 // loop_body
                  %v799 = vld [vmem:[%s797] sm:$0xff]
                  %800 = vst [vmem:[%s798] sm:$0xff] %v799
                  %s801 = sadd.s32 1, %s796
                  %p802 = scmp.ge.s32.totalorder %s801, %s784
                  %s803 = scalar_select %p802, 0, %s801
                  %s804 = smul.u32 %s803, 8
                  %s805 = smul.u32 %s803, 8
                  %s806 = scalar_lea.vmem %s787, %s804 [#allocation3]
                  %s807 = scalar_lea.vmem %s789, %s805
                $region86: #{tpu_custom_call.1} parent=73 // loop_footer
                  %s793 = sadd.s32 %s791, 1
                $region87: #{tpu_custom_call.1} parent=73 // loop_footer_branch
                  %790 = sbr.rel target = $region83
                $region88: #{tpu_custom_call.1} parent=73 // loop_exit
                  _
              $region74: #{tpu_custom_call.1} parent=51 // pred_fallthru
                _
              // Predicated region
              $region89: #{tpu_custom_call.1} parent=51 // pred_check
                _
              $region90: #{tpu_custom_call.1} parent=51 // pred_check_branch
                %809 = sbr.rel target = $region92
              $region91: #{tpu_custom_call.1} parent=51 // pred_region
                _
              $region92: #{tpu_custom_call.1} parent=51 // pred_fallthru
                _
            $region52: #{tpu_custom_call.1} parent=47 // pred_fallthru
              _
            // Predicated region
            $region53: #{tpu_custom_call.1} parent=47 // pred_check
              _
            $region54: #{tpu_custom_call.1} parent=47 // pred_check_branch
              %689 = sbr.rel target = $region56
            $region55: #{tpu_custom_call.1} parent=47 // pred_region
              %s691 = ssub.s32 256, 1
              %s692 = sdiv.u32.pop %s678, 7
              %s693 = srem.u32.pop %s678, 7
              // While loop
              $region57: #{tpu_custom_call.1} parent=55 // loop_pre_header
                _
              $region58: #{tpu_custom_call.1} parent=55 // loop_header
                %s695 = sphi 0, %s697
                %p696 = scmp.ge.s32.totalorder %s695, %s692
                %s700 = sphi 0, %s719
                %s701 = sphi %s667, %s722
                %s702 = sphi %s682, %s723
              $region59: #{tpu_custom_call.1} parent=55 // loop_header_branch
                %699 = sbr.rel (%p696) target = $region63
              $region60: #{tpu_custom_call.1} parent=55 // loop_body
                %v703 = vld [vmem:[%s701] sm:%s691]
                %704 = vst [vmem:[%s702] sm:%s691] %v703
                %v705 = vld [vmem:[%s701 + $0x8] sm:%s691]
                %706 = vst [vmem:[%s702 + $0x8] sm:%s691] %v705
                %v707 = vld [vmem:[%s701 + $0x10] sm:%s691]
                %708 = vst [vmem:[%s702 + $0x10] sm:%s691] %v707
                %v709 = vld [vmem:[%s701 + $0x18] sm:%s691]
                %710 = vst [vmem:[%s702 + $0x18] sm:%s691] %v709
                %v711 = vld [vmem:[%s701 + $0x20] sm:%s691]
                %712 = vst [vmem:[%s702 + $0x20] sm:%s691] %v711
                %v713 = vld [vmem:[%s701 + $0x28] sm:%s691]
                %714 = vst [vmem:[%s702 + $0x28] sm:%s691] %v713
                %v715 = vld [vmem:[%s701 + $0x30] sm:%s691]
                %716 = vst [vmem:[%s702 + $0x30] sm:%s691] %v715
                %s717 = sadd.s32 1, %s700
                %p718 = scmp.ge.s32.totalorder %s717, %s692
                %s719 = scalar_select %p718, 0, %s717
                %s720 = smul.u32 %s719, 56
                %s721 = smul.u32 %s719, 56
                %s722 = scalar_lea.vmem %s667, %s720 [#allocation3]
                %s723 = scalar_lea.vmem %s682, %s721
              $region61: #{tpu_custom_call.1} parent=55 // loop_footer
                %s697 = sadd.s32 %s695, 1
              $region62: #{tpu_custom_call.1} parent=55 // loop_footer_branch
                %694 = sbr.rel target = $region58
              $region63: #{tpu_custom_call.1} parent=55 // loop_exit
                _
              %s724 = sdiv.u32.pop %s678, 7
              %s725 = srem.u32.pop %s678, 7
              %s726 = smul.u32 %s724, 7
              %s727 = smul.u32 8, %s726
              %s728 = scalar_lea.vmem %s667, %s727 [#allocation3]
              %s729 = smul.u32 8, %s726
              %s730 = scalar_lea.vmem %s682, %s729
              // While loop
              $region64: #{tpu_custom_call.1} parent=55 // loop_pre_header
                _
              $region65: #{tpu_custom_call.1} parent=55 // loop_header
                %s732 = sphi 0, %s734
                %p733 = scmp.ge.s32.totalorder %s732, %s725
                %s737 = sphi 0, %s744
                %s738 = sphi %s728, %s747
                %s739 = sphi %s730, %s748
              $region66: #{tpu_custom_call.1} parent=55 // loop_header_branch
                %736 = sbr.rel (%p733) target = $region70
              $region67: #{tpu_custom_call.1} parent=55 // loop_body
                %v740 = vld [vmem:[%s738] sm:%s691]
                %741 = vst [vmem:[%s739] sm:%s691] %v740
                %s742 = sadd.s32 1, %s737
                %p743 = scmp.ge.s32.totalorder %s742, %s725
                %s744 = scalar_select %p743, 0, %s742
                %s745 = smul.u32 %s744, 8
                %s746 = smul.u32 %s744, 8
                %s747 = scalar_lea.vmem %s728, %s745 [#allocation3]
                %s748 = scalar_lea.vmem %s730, %s746
              $region68: #{tpu_custom_call.1} parent=55 // loop_footer
                %s734 = sadd.s32 %s732, 1
              $region69: #{tpu_custom_call.1} parent=55 // loop_footer_branch
                %731 = sbr.rel target = $region65
              $region70: #{tpu_custom_call.1} parent=55 // loop_exit
                _
            $region56: #{tpu_custom_call.1} parent=47 // pred_fallthru
              _
          $region48: #{tpu_custom_call.1} parent=43 // pred_fallthru
            _
          %810 = vnop
        $region44: #{tpu_custom_call.1} parent=39 // pred_fallthru
          _
        // Predicated region
        $region93: #{tpu_custom_call.1} parent=39 // pred_check
          %p811 = pneg %p179
        $region94: #{tpu_custom_call.1} parent=39 // pred_check_branch
          %813 = sbr.rel (%p811) target = $region96
        $region95: #{tpu_custom_call.1} parent=39 // pred_region
          %s814 = smul.u32 7, %s20
          %s815 = ssub.s32 25, %s814
          %p816 = scmp.lt.s32.totalorder %s815, 7
          %s817 = scalar_select %p816, %s815, 7
          %s818 = smul.u32 8, %s817
          %p819 = scmp.ne.s32.totalorder 0, %s818
          %s820 = smul.addr %s814, 8
          %s821 = scalar_lea.vmem %s6, %s820
          // Predicated region
          $region97: #{tpu_custom_call.1} parent=95 // pred_check
            %p822 = pneg %p819
          $region98: #{tpu_custom_call.1} parent=95 // pred_check_branch
            %824 = sbr.rel (%p822) target = $region100
          $region99: #{tpu_custom_call.1} parent=95 // pred_region
            // Predicated region
            $region101: #{tpu_custom_call.1} parent=99 // pred_check
              _
            $region102: #{tpu_custom_call.1} parent=99 // pred_check_branch
              %826 = sbr.rel (0) target = $region104
            $region103: #{tpu_custom_call.1} parent=99 // pred_region
              // Predicated region
              $region123: #{tpu_custom_call.1} parent=103 // pred_check
                _
              $region124: #{tpu_custom_call.1} parent=103 // pred_check_branch
                %889 = sbr.rel (0) target = $region126
              $region125: #{tpu_custom_call.1} parent=103 // pred_region
                %s890 = sdiv.u32.pop %s817, 7
                %s891 = srem.u32.pop %s817, 7
                // While loop
                $region127: #{tpu_custom_call.1} parent=125 // loop_pre_header
                  _
                $region128: #{tpu_custom_call.1} parent=125 // loop_header
                  %s893 = sphi 0, %s895
                  %p894 = scmp.ge.s32.totalorder %s893, %s890
                  %s898 = sphi 0, %s917
                  %s899 = sphi %s671, %s920
                  %s900 = sphi %s821, %s921
                $region129: #{tpu_custom_call.1} parent=125 // loop_header_branch
                  %897 = sbr.rel (%p894) target = $region133
                $region130: #{tpu_custom_call.1} parent=125 // loop_body
                  %v901 = vld [vmem:[%s899] sm:$0xff]
                  %902 = vst [vmem:[%s900] sm:$0xff] %v901
                  %v903 = vld [vmem:[%s899 + $0x8] sm:$0xff]
                  %904 = vst [vmem:[%s900 + $0x8] sm:$0xff] %v903
                  %v905 = vld [vmem:[%s899 + $0x10] sm:$0xff]
                  %906 = vst [vmem:[%s900 + $0x10] sm:$0xff] %v905
                  %v907 = vld [vmem:[%s899 + $0x18] sm:$0xff]
                  %908 = vst [vmem:[%s900 + $0x18] sm:$0xff] %v907
                  %v909 = vld [vmem:[%s899 + $0x20] sm:$0xff]
                  %910 = vst [vmem:[%s900 + $0x20] sm:$0xff] %v909
                  %v911 = vld [vmem:[%s899 + $0x28] sm:$0xff]
                  %912 = vst [vmem:[%s900 + $0x28] sm:$0xff] %v911
                  %v913 = vld [vmem:[%s899 + $0x30] sm:$0xff]
                  %914 = vst [vmem:[%s900 + $0x30] sm:$0xff] %v913
                  %s915 = sadd.s32 1, %s898
                  %p916 = scmp.ge.s32.totalorder %s915, %s890
                  %s917 = scalar_select %p916, 0, %s915
                  %s918 = smul.u32 %s917, 56
                  %s919 = smul.u32 %s917, 56
                  %s920 = scalar_lea.vmem %s671, %s918 [#allocation4]
                  %s921 = scalar_lea.vmem %s821, %s919
                $region131: #{tpu_custom_call.1} parent=125 // loop_footer
                  %s895 = sadd.s32 %s893, 1
                $region132: #{tpu_custom_call.1} parent=125 // loop_footer_branch
                  %892 = sbr.rel target = $region128
                $region133: #{tpu_custom_call.1} parent=125 // loop_exit
                  _
                %s922 = sdiv.u32.pop %s817, 7
                %s923 = srem.u32.pop %s817, 7
                %s924 = smul.u32 %s922, 7
                %s925 = smul.u32 8, %s924
                %s926 = scalar_lea.vmem %s671, %s925 [#allocation4]
                %s927 = smul.u32 8, %s924
                %s928 = scalar_lea.vmem %s821, %s927
                // While loop
                $region134: #{tpu_custom_call.1} parent=125 // loop_pre_header
                  _
                $region135: #{tpu_custom_call.1} parent=125 // loop_header
                  %s930 = sphi 0, %s932
                  %p931 = scmp.ge.s32.totalorder %s930, %s923
                  %s935 = sphi 0, %s942
                  %s936 = sphi %s926, %s945
                  %s937 = sphi %s928, %s946
                $region136: #{tpu_custom_call.1} parent=125 // loop_header_branch
                  %934 = sbr.rel (%p931) target = $region140
                $region137: #{tpu_custom_call.1} parent=125 // loop_body
                  %v938 = vld [vmem:[%s936] sm:$0xff]
                  %939 = vst [vmem:[%s937] sm:$0xff] %v938
                  %s940 = sadd.s32 1, %s935
                  %p941 = scmp.ge.s32.totalorder %s940, %s923
                  %s942 = scalar_select %p941, 0, %s940
                  %s943 = smul.u32 %s942, 8
                  %s944 = smul.u32 %s942, 8
                  %s945 = scalar_lea.vmem %s926, %s943 [#allocation4]
                  %s946 = scalar_lea.vmem %s928, %s944
                $region138: #{tpu_custom_call.1} parent=125 // loop_footer
                  %s932 = sadd.s32 %s930, 1
                $region139: #{tpu_custom_call.1} parent=125 // loop_footer_branch
                  %929 = sbr.rel target = $region135
                $region140: #{tpu_custom_call.1} parent=125 // loop_exit
                  _
              $region126: #{tpu_custom_call.1} parent=103 // pred_fallthru
                _
              // Predicated region
              $region141: #{tpu_custom_call.1} parent=103 // pred_check
                _
              $region142: #{tpu_custom_call.1} parent=103 // pred_check_branch
                %948 = sbr.rel target = $region144
              $region143: #{tpu_custom_call.1} parent=103 // pred_region
                _
              $region144: #{tpu_custom_call.1} parent=103 // pred_fallthru
                _
            $region104: #{tpu_custom_call.1} parent=99 // pred_fallthru
              _
            // Predicated region
            $region105: #{tpu_custom_call.1} parent=99 // pred_check
              _
            $region106: #{tpu_custom_call.1} parent=99 // pred_check_branch
              %828 = sbr.rel target = $region108
            $region107: #{tpu_custom_call.1} parent=99 // pred_region
              %s830 = ssub.s32 256, 1
              %s831 = sdiv.u32.pop %s817, 7
              %s832 = srem.u32.pop %s817, 7
              // While loop
              $region109: #{tpu_custom_call.1} parent=107 // loop_pre_header
                _
              $region110: #{tpu_custom_call.1} parent=107 // loop_header
                %s834 = sphi 0, %s836
                %p835 = scmp.ge.s32.totalorder %s834, %s831
                %s839 = sphi 0, %s858
                %s840 = sphi %s671, %s861
                %s841 = sphi %s821, %s862
              $region111: #{tpu_custom_call.1} parent=107 // loop_header_branch
                %838 = sbr.rel (%p835) target = $region115
              $region112: #{tpu_custom_call.1} parent=107 // loop_body
                %v842 = vld [vmem:[%s840] sm:%s830]
                %843 = vst [vmem:[%s841] sm:%s830] %v842
                %v844 = vld [vmem:[%s840 + $0x8] sm:%s830]
                %845 = vst [vmem:[%s841 + $0x8] sm:%s830] %v844
                %v846 = vld [vmem:[%s840 + $0x10] sm:%s830]
                %847 = vst [vmem:[%s841 + $0x10] sm:%s830] %v846
                %v848 = vld [vmem:[%s840 + $0x18] sm:%s830]
                %849 = vst [vmem:[%s841 + $0x18] sm:%s830] %v848
                %v850 = vld [vmem:[%s840 + $0x20] sm:%s830]
                %851 = vst [vmem:[%s841 + $0x20] sm:%s830] %v850
                %v852 = vld [vmem:[%s840 + $0x28] sm:%s830]
                %853 = vst [vmem:[%s841 + $0x28] sm:%s830] %v852
                %v854 = vld [vmem:[%s840 + $0x30] sm:%s830]
                %855 = vst [vmem:[%s841 + $0x30] sm:%s830] %v854
                %s856 = sadd.s32 1, %s839
                %p857 = scmp.ge.s32.totalorder %s856, %s831
                %s858 = scalar_select %p857, 0, %s856
                %s859 = smul.u32 %s858, 56
                %s860 = smul.u32 %s858, 56
                %s861 = scalar_lea.vmem %s671, %s859 [#allocation4]
                %s862 = scalar_lea.vmem %s821, %s860
              $region113: #{tpu_custom_call.1} parent=107 // loop_footer
                %s836 = sadd.s32 %s834, 1
              $region114: #{tpu_custom_call.1} parent=107 // loop_footer_branch
                %833 = sbr.rel target = $region110
              $region115: #{tpu_custom_call.1} parent=107 // loop_exit
                _
              %s863 = sdiv.u32.pop %s817, 7
              %s864 = srem.u32.pop %s817, 7
              %s865 = smul.u32 %s863, 7
              %s866 = smul.u32 8, %s865
              %s867 = scalar_lea.vmem %s671, %s866 [#allocation4]
              %s868 = smul.u32 8, %s865
              %s869 = scalar_lea.vmem %s821, %s868
              // While loop
              $region116: #{tpu_custom_call.1} parent=107 // loop_pre_header
                _
              $region117: #{tpu_custom_call.1} parent=107 // loop_header
                %s871 = sphi 0, %s873
                %p872 = scmp.ge.s32.totalorder %s871, %s864
                %s876 = sphi 0, %s883
                %s877 = sphi %s867, %s886
                %s878 = sphi %s869, %s887
              $region118: #{tpu_custom_call.1} parent=107 // loop_header_branch
                %875 = sbr.rel (%p872) target = $region122
              $region119: #{tpu_custom_call.1} parent=107 // loop_body
                %v879 = vld [vmem:[%s877] sm:%s830]
                %880 = vst [vmem:[%s878] sm:%s830] %v879
                %s881 = sadd.s32 1, %s876
                %p882 = scmp.ge.s32.totalorder %s881, %s864
                %s883 = scalar_select %p882, 0, %s881
                %s884 = smul.u32 %s883, 8
                %s885 = smul.u32 %s883, 8
                %s886 = scalar_lea.vmem %s867, %s884 [#allocation4]
                %s887 = scalar_lea.vmem %s869, %s885
              $region120: #{tpu_custom_call.1} parent=107 // loop_footer
                %s873 = sadd.s32 %s871, 1
              $region121: #{tpu_custom_call.1} parent=107 // loop_footer_branch
                %870 = sbr.rel target = $region117
              $region122: #{tpu_custom_call.1} parent=107 // loop_exit
                _
            $region108: #{tpu_custom_call.1} parent=99 // pred_fallthru
              _
          $region100: #{tpu_custom_call.1} parent=95 // pred_fallthru
            _
          %949 = vnop
        $region96: #{tpu_custom_call.1} parent=39 // pred_fallthru
          _
      $region40: #{tpu_custom_call.1} parent=5 // pred_fallthru
        _
      %p950 = scmp.le.s32.totalorder 2, %s15
      // Predicated region
      $region145: #{tpu_custom_call.1} parent=5 // pred_check
        %p951 = pneg %p950
      $region146: #{tpu_custom_call.1} parent=5 // pred_check_branch
        %953 = sbr.rel (%p951) target = $region148
      $region147: #{tpu_custom_call.1} parent=5 // pred_region
        %s954 = ssub.s32 %s15, 2
        // Predicated region
        $region149: #{tpu_custom_call.1} parent=147 // pred_check
          %p955 = pneg %p159
        $region150: #{tpu_custom_call.1} parent=147 // pred_check_branch
          %957 = sbr.rel (%p955) target = $region152
        $region151: #{tpu_custom_call.1} parent=147 // pred_region
          %s958 = sand.u32 %s144, 1
          %s959 = sand.u32 %s144, 1
          %s960 = smul.addr %s959, 56
          %s961 = scalar_lea.vmem [#allocation3], %s960
        $region152: #{tpu_custom_call.1} parent=147 // pred_fallthru
          _
        // Predicated region
        $region153: #{tpu_custom_call.1} parent=147 // pred_check
          %p962 = pneg %p185
        $region154: #{tpu_custom_call.1} parent=147 // pred_check_branch
          %964 = sbr.rel (%p962) target = $region156
        $region155: #{tpu_custom_call.1} parent=147 // pred_region
          %s965 = sand.u32 %s170, 1
          %s966 = sand.u32 %s170, 1
          %s967 = smul.addr %s966, 56
          %s968 = scalar_lea.vmem [#allocation4], %s967
        $region156: #{tpu_custom_call.1} parent=147 // pred_fallthru
          _
      $region148: #{tpu_custom_call.1} parent=5 // pred_fallthru
        _
    $region6: #{tpu_custom_call.1} parent=1 // loop_footer
      %s19 = sadd.s32 1, %s15
    $region7: #{tpu_custom_call.1} parent=1 // loop_footer_branch
      %14 = sbr.rel target = $region3
    $region8: #{tpu_custom_call.1} parent=1 // loop_exit
      _

</llo_original>
